<compile_context>
chip_gen: v6e
topology: v6e:2x2x1
jax: 0.10.0
libtpu: 0.0.40
codegen_flags: <defaults>
</compile_context>

<pallas_src>
from functools import partial

import jax
import jax.numpy as jnp
from jax.experimental import pallas as pl
from jax.experimental.pallas import tpu as pltpu


def _round_up(n, m):
    return (n + m - 1) // m * m


def ode_rk4_kernel(x_ref, wx_ref, sb_ref, out_ref, *, nlayers):
    """One batch tile: single torchdiffeq rk4 (3/8-rule) step, all in VMEM."""
    x = x_ref[...]  # (TB, HP) f32, lane-dense (HP == 128 when packed)

    # Hoist only the small (1, HP) stage-folded biases (t_s*wt + b).  The
    # HPxHP weights are read at the matmul site so they never pin vregs.
    sb = [[sb_ref[s, l] for l in range(nlayers)] for s in range(4)]

    def f(y, s):
        # ODEfunc.forward: (nlayer-1) x [LinearT; tanh].  concat([t, x]) is
        # folded into  y @ Wx + (t*wt + b);  Wx here is the packed
        # block-diagonal kron(I_P, W[:, 1:].T).  Static unroll (L is tiny).
        for l in range(nlayers):
            y = jnp.tanh(
                jnp.dot(y, wx_ref[l], preferred_element_type=jnp.float32)
                + sb[s][l]
            )
        return y

    # torchdiffeq fixed-grid rk4 (rk4_alt_step_func), single step 0 -> 1.
    k1 = f(x, 0)
    k2 = f(x + k1 * (1.0 / 3.0), 1)
    k3 = f(x + (k2 - k1 * (1.0 / 3.0)), 2)
    k4 = f(x + (k1 - k2 + k3), 3)
    out_ref[...] = (x + (k1 + 3.0 * (k2 + k3) + k4) * 0.125).astype(out_ref.dtype)


def ode_block_forward(x, wt, wx, b, *, max_tile_b=2048):
    """ODEBlock.forward: one rk4 step of ODEfunc from t=0 to t=1.

    x  : (B, H)      f32
    wt : (L, 1, H)   t-column weight row   (L = nlayer - 1)
    wx : (L, H, H)   x->hidden weight, pre-transposed for x @ wx
    b  : (L, 1, H)   bias
    """
    B, H = x.shape
    L = wx.shape[0]

    # ---- Lane packing: pack P = 128//H batch rows per 128-lane row (free
    # row-major reshape) with block-diagonal kron(I_P, Wx) weights. ----
    P = 128 // H if (H < 128 and 128 % H == 0) else 1
    HP = H * P

    Bp = _round_up(B, P)
    xp = x if Bp == B else jnp.pad(x, ((0, Bp - B), (0, 0)))
    Br = Bp // P
    x_pk = xp.reshape(Br, HP)

    eye = jnp.eye(P, dtype=wx.dtype)
    wx_pk = jnp.einsum("pq,lij->lpiqj", eye, wx).reshape(L, HP, HP)
    wt_pk = jnp.tile(wt, (1, 1, P))  # (L, 1, HP)
    b_pk = jnp.tile(b, (1, 1, P))    # (L, 1, HP)

    # Pre-fold the 4 RK stage biases:  t_s*wt + b,  t_s in {0, 1/3, 2/3, 1}.
    ts = jnp.array([0.0, 1.0 / 3.0, 2.0 / 3.0, 1.0], dtype=x.dtype)
    sb = b_pk[None] + ts[:, None, None, None] * wt_pk[None]  # (4, L, 1, HP)

    # ---- Batch tile: big tiles amortize per-grid-step overhead; VMEM use
    # is tiny, so leave the default scoped VMEM limit alone.  On v7x keep
    # >= 2 grid steps so "parallel" can split the batch across both TCs. ----
    max_tile_b = max(8, (max_tile_b // 8) * 8)
    tb = min(max_tile_b, _round_up(Br, 8))
    if Br >= 16:
        tb = min(tb, _round_up((Br + 1) // 2, 8))
    tb = max(8, tb)

    Brp = _round_up(Br, tb)
    if Brp != Br:
        x_pk = jnp.pad(x_pk, ((0, Brp - Br), (0, 0)))

    out = pl.pallas_call(
        partial(ode_rk4_kernel, nlayers=L),
        out_shape=jax.ShapeDtypeStruct((Brp, HP), x.dtype),
        grid=(Brp // tb,),
        in_specs=[
            pl.BlockSpec((tb, HP), lambda i: (i, 0)),             # x: batch-tiled
            pl.BlockSpec((L, HP, HP), lambda i: (0, 0, 0)),       # weights: resident
            pl.BlockSpec((4, L, 1, HP), lambda i: (0, 0, 0, 0)),  # stage biases
        ],
        out_specs=pl.BlockSpec((tb, HP), lambda i: (i, 0)),
        compiler_params=pltpu.CompilerParams(
            # Batch tiles are independent -> shard across v7x's 2 TensorCores;
            # harmless on single-TC v5e/v6e.
            dimension_semantics=("parallel",),
        ),
    )(x_pk, wx_pk, sb)

    out = out[:Br].reshape(Bp, H)
    return out if Bp == B else out[:B]


def _reference(x, wt, wx, b):
    """Pure-JAX reference of the same forward pass."""
    def f(t, y):
        for l in range(wx.shape[0]):
            y = jnp.tanh(y @ wx[l] + t * wt[l] + b[l])
        return y

    k1 = f(0.0, x)
    k2 = f(1.0 / 3.0, x + k1 / 3.0)
    k3 = f(2.0 / 3.0, x + (k2 - k1 / 3.0))
    k4 = f(1.0, x + (k1 - k2 + k3))
    return x + (k1 + 3.0 * (k2 + k3) + k4) * 0.125


if __name__ == "__main__":
    B, H, nlayer = 8, 32, 3
    L = nlayer - 1

    key = jax.random.PRNGKey(0)
    kw, kb, kx = jax.random.split(key, 3)

    # nn.Linear(H+1, H) init: U(-1/sqrt(fan_in), 1/sqrt(fan_in)), fan_in = H+1.
    bound = 1.0 / float(H + 1) ** 0.5
    W = jax.random.uniform(kw, (H, H + 1), jnp.float32, -bound, bound)  # (out, in)
    bias = jax.random.uniform(kb, (H,), jnp.float32, -bound, bound)

    # deepcopy semantics: every layer starts from the same parameters.
    wt = jnp.tile(W[:, 0][None, None, :], (L, 1, 1))    # (L, 1, H)
    wx = jnp.tile(W[:, 1:].T[None, :, :], (L, 1, 1))    # (L, H, H)
    b = jnp.tile(bias[None, None, :], (L, 1, 1))        # (L, 1, H)

    x = jax.random.normal(kx, (B, H), jnp.float32)

    out = jax.block_until_ready(ode_block_forward(x, wt, wx, b))
    ref = _reference(x, wt, wx, b)
    assert out.shape == (B, H) and out.dtype == jnp.float32
    assert jnp.allclose(out, ref, atol=1e-5, rtol=1e-5)

    # Exercise multi-tile grid + both paddings (B not multiple of P or tile).
    x2 = jax.random.normal(jax.random.PRNGKey(1), (203, H), jnp.float32)
    out2 = jax.block_until_ready(ode_block_forward(x2, wt, wx, b, max_tile_b=32))
    ref2 = _reference(x2, wt, wx, b)
    assert out2.shape == (203, H)
    assert jnp.allclose(out2, ref2, atol=1e-5, rtol=1e-5)

    print("KERNEL_OK")
</pallas_src>

<mosaic_0001>
module attributes {stable_mosaic.version = 11 : i64} {
  func.func @ode_rk4_kernel(%arg0: i32, %arg1: memref<8x128xf32, #tpu.memory_space<vmem>>, %arg2: memref<2x128x128xf32, #tpu.memory_space<vmem>>, %arg3: memref<4x2x1x128xf32, #tpu.memory_space<vmem>>, %arg4: memref<8x128xf32, #tpu.memory_space<vmem>>) attributes {dimension_semantics = [#tpu.dimension_semantics<parallel>], iteration_bounds = array<i64: 1>, scalar_prefetch = 0 : i64, scratch_operands = 0 : i64, tpu.core_type = #tpu.core_type<tc>, window_params = [{transform_indices = @transform_0, window_bounds = array<i64: 8, 128>}, {pipeline_mode = #tpu.pipeline_mode<synchronous>, transform_indices = @transform_1, window_bounds = array<i64: 2, 128, 128>}, {pipeline_mode = #tpu.pipeline_mode<synchronous>, transform_indices = @transform_2, window_bounds = array<i64: 4, 2, 1, 128>}, {transform_indices = @transform_3, window_bounds = array<i64: 8, 128>}]} {
    %c0 = arith.constant 0 : index
    %c0_0 = arith.constant 0 : index
    %0 = vector.load %arg1[%c0, %c0_0] : memref<8x128xf32, #tpu.memory_space<vmem>>, vector<8x128xf32>
    %c0_1 = arith.constant 0 : index
    %c0_2 = arith.constant 0 : index
    %c0_3 = arith.constant 0 : index
    %c0_4 = arith.constant 0 : index
    %1 = vector.load %arg3[%c0_1, %c0_2, %c0_3, %c0_4] : memref<4x2x1x128xf32, #tpu.memory_space<vmem>>, vector<1x1x1x128xf32>
    %2 = vector.shape_cast %1 : vector<1x1x1x128xf32> to vector<1x128xf32>
    %c0_5 = arith.constant 0 : index
    %c1 = arith.constant 1 : index
    %c0_6 = arith.constant 0 : index
    %c0_7 = arith.constant 0 : index
    %3 = vector.load %arg3[%c0_5, %c1, %c0_6, %c0_7] : memref<4x2x1x128xf32, #tpu.memory_space<vmem>>, vector<1x1x1x128xf32>
    %4 = vector.shape_cast %3 : vector<1x1x1x128xf32> to vector<1x128xf32>
    %c1_8 = arith.constant 1 : index
    %c0_9 = arith.constant 0 : index
    %c0_10 = arith.constant 0 : index
    %c0_11 = arith.constant 0 : index
    %5 = vector.load %arg3[%c1_8, %c0_9, %c0_10, %c0_11] : memref<4x2x1x128xf32, #tpu.memory_space<vmem>>, vector<1x1x1x128xf32>
    %6 = vector.shape_cast %5 : vector<1x1x1x128xf32> to vector<1x128xf32>
    %c1_12 = arith.constant 1 : index
    %c1_13 = arith.constant 1 : index
    %c0_14 = arith.constant 0 : index
    %c0_15 = arith.constant 0 : index
    %7 = vector.load %arg3[%c1_12, %c1_13, %c0_14, %c0_15] : memref<4x2x1x128xf32, #tpu.memory_space<vmem>>, vector<1x1x1x128xf32>
    %8 = vector.shape_cast %7 : vector<1x1x1x128xf32> to vector<1x128xf32>
    %c2 = arith.constant 2 : index
    %c0_16 = arith.constant 0 : index
    %c0_17 = arith.constant 0 : index
    %c0_18 = arith.constant 0 : index
    %9 = vector.load %arg3[%c2, %c0_16, %c0_17, %c0_18] : memref<4x2x1x128xf32, #tpu.memory_space<vmem>>, vector<1x1x1x128xf32>
    %10 = vector.shape_cast %9 : vector<1x1x1x128xf32> to vector<1x128xf32>
    %c2_19 = arith.constant 2 : index
    %c1_20 = arith.constant 1 : index
    %c0_21 = arith.constant 0 : index
    %c0_22 = arith.constant 0 : index
    %11 = vector.load %arg3[%c2_19, %c1_20, %c0_21, %c0_22] : memref<4x2x1x128xf32, #tpu.memory_space<vmem>>, vector<1x1x1x128xf32>
    %12 = vector.shape_cast %11 : vector<1x1x1x128xf32> to vector<1x128xf32>
    %c3 = arith.constant 3 : index
    %c0_23 = arith.constant 0 : index
    %c0_24 = arith.constant 0 : index
    %c0_25 = arith.constant 0 : index
    %13 = vector.load %arg3[%c3, %c0_23, %c0_24, %c0_25] : memref<4x2x1x128xf32, #tpu.memory_space<vmem>>, vector<1x1x1x128xf32>
    %14 = vector.shape_cast %13 : vector<1x1x1x128xf32> to vector<1x128xf32>
    %c3_26 = arith.constant 3 : index
    %c1_27 = arith.constant 1 : index
    %c0_28 = arith.constant 0 : index
    %c0_29 = arith.constant 0 : index
    %15 = vector.load %arg3[%c3_26, %c1_27, %c0_28, %c0_29] : memref<4x2x1x128xf32, #tpu.memory_space<vmem>>, vector<1x1x1x128xf32>
    %16 = vector.shape_cast %15 : vector<1x1x1x128xf32> to vector<1x128xf32>
    %c0_30 = arith.constant 0 : index
    %c0_31 = arith.constant 0 : index
    %c0_32 = arith.constant 0 : index
    %17 = vector.load %arg2[%c0_30, %c0_31, %c0_32] : memref<2x128x128xf32, #tpu.memory_space<vmem>>, vector<1x128x128xf32>
    %18 = vector.shape_cast %17 : vector<1x128x128xf32> to vector<128x128xf32>
    %cst = arith.constant dense<0.000000e+00> : vector<8x128xf32>
    %19 = tpu.matmul %0, %18, %cst {dimension_numbers = #tpu.dot_dimension_numbers<[1], [0], [0], [1], [0, 0, 1, 1], [], []>} : vector<8x128xf32>, vector<128x128xf32>, vector<8x128xf32> -> vector<8x128xf32>
    %20 = vector.broadcast %2 : vector<1x128xf32> to vector<8x128xf32>
    %21 = arith.addf %19, %20 : vector<8x128xf32>
    %22 = math.tanh %21 : vector<8x128xf32>
    %c1_33 = arith.constant 1 : index
    %c0_34 = arith.constant 0 : index
    %c0_35 = arith.constant 0 : index
    %23 = vector.load %arg2[%c1_33, %c0_34, %c0_35] : memref<2x128x128xf32, #tpu.memory_space<vmem>>, vector<1x128x128xf32>
    %24 = vector.shape_cast %23 : vector<1x128x128xf32> to vector<128x128xf32>
    %cst_36 = arith.constant dense<0.000000e+00> : vector<8x128xf32>
    %25 = tpu.matmul %22, %24, %cst_36 {dimension_numbers = #tpu.dot_dimension_numbers<[1], [0], [0], [1], [0, 0, 1, 1], [], []>} : vector<8x128xf32>, vector<128x128xf32>, vector<8x128xf32> -> vector<8x128xf32>
    %26 = vector.broadcast %4 : vector<1x128xf32> to vector<8x128xf32>
    %27 = arith.addf %25, %26 : vector<8x128xf32>
    %28 = math.tanh %27 : vector<8x128xf32>
    %cst_37 = arith.constant 0.333333343 : f32
    %29 = vector.broadcast %cst_37 : f32 to vector<8x128xf32>
    %30 = arith.mulf %28, %29 : vector<8x128xf32>
    %31 = arith.addf %0, %30 : vector<8x128xf32>
    %c0_38 = arith.constant 0 : index
    %c0_39 = arith.constant 0 : index
    %c0_40 = arith.constant 0 : index
    %32 = vector.load %arg2[%c0_38, %c0_39, %c0_40] : memref<2x128x128xf32, #tpu.memory_space<vmem>>, vector<1x128x128xf32>
    %33 = vector.shape_cast %32 : vector<1x128x128xf32> to vector<128x128xf32>
    %cst_41 = arith.constant dense<0.000000e+00> : vector<8x128xf32>
    %34 = tpu.matmul %31, %33, %cst_41 {dimension_numbers = #tpu.dot_dimension_numbers<[1], [0], [0], [1], [0, 0, 1, 1], [], []>} : vector<8x128xf32>, vector<128x128xf32>, vector<8x128xf32> -> vector<8x128xf32>
    %35 = vector.broadcast %6 : vector<1x128xf32> to vector<8x128xf32>
    %36 = arith.addf %34, %35 : vector<8x128xf32>
    %37 = math.tanh %36 : vector<8x128xf32>
    %c1_42 = arith.constant 1 : index
    %c0_43 = arith.constant 0 : index
    %c0_44 = arith.constant 0 : index
    %38 = vector.load %arg2[%c1_42, %c0_43, %c0_44] : memref<2x128x128xf32, #tpu.memory_space<vmem>>, vector<1x128x128xf32>
    %39 = vector.shape_cast %38 : vector<1x128x128xf32> to vector<128x128xf32>
    %cst_45 = arith.constant dense<0.000000e+00> : vector<8x128xf32>
    %40 = tpu.matmul %37, %39, %cst_45 {dimension_numbers = #tpu.dot_dimension_numbers<[1], [0], [0], [1], [0, 0, 1, 1], [], []>} : vector<8x128xf32>, vector<128x128xf32>, vector<8x128xf32> -> vector<8x128xf32>
    %41 = vector.broadcast %8 : vector<1x128xf32> to vector<8x128xf32>
    %42 = arith.addf %40, %41 : vector<8x128xf32>
    %43 = math.tanh %42 : vector<8x128xf32>
    %cst_46 = arith.constant 0.333333343 : f32
    %44 = vector.broadcast %cst_46 : f32 to vector<8x128xf32>
    %45 = arith.mulf %28, %44 : vector<8x128xf32>
    %46 = arith.subf %43, %45 : vector<8x128xf32>
    %47 = arith.addf %0, %46 : vector<8x128xf32>
    %c0_47 = arith.constant 0 : index
    %c0_48 = arith.constant 0 : index
    %c0_49 = arith.constant 0 : index
    %48 = vector.load %arg2[%c0_47, %c0_48, %c0_49] : memref<2x128x128xf32, #tpu.memory_space<vmem>>, vector<1x128x128xf32>
    %49 = vector.shape_cast %48 : vector<1x128x128xf32> to vector<128x128xf32>
    %cst_50 = arith.constant dense<0.000000e+00> : vector<8x128xf32>
    %50 = tpu.matmul %47, %49, %cst_50 {dimension_numbers = #tpu.dot_dimension_numbers<[1], [0], [0], [1], [0, 0, 1, 1], [], []>} : vector<8x128xf32>, vector<128x128xf32>, vector<8x128xf32> -> vector<8x128xf32>
    %51 = vector.broadcast %10 : vector<1x128xf32> to vector<8x128xf32>
    %52 = arith.addf %50, %51 : vector<8x128xf32>
    %53 = math.tanh %52 : vector<8x128xf32>
    %c1_51 = arith.constant 1 : index
    %c0_52 = arith.constant 0 : index
    %c0_53 = arith.constant 0 : index
    %54 = vector.load %arg2[%c1_51, %c0_52, %c0_53] : memref<2x128x128xf32, #tpu.memory_space<vmem>>, vector<1x128x128xf32>
    %55 = vector.shape_cast %54 : vector<1x128x128xf32> to vector<128x128xf32>
    %cst_54 = arith.constant dense<0.000000e+00> : vector<8x128xf32>
    %56 = tpu.matmul %53, %55, %cst_54 {dimension_numbers = #tpu.dot_dimension_numbers<[1], [0], [0], [1], [0, 0, 1, 1], [], []>} : vector<8x128xf32>, vector<128x128xf32>, vector<8x128xf32> -> vector<8x128xf32>
    %57 = vector.broadcast %12 : vector<1x128xf32> to vector<8x128xf32>
    %58 = arith.addf %56, %57 : vector<8x128xf32>
    %59 = math.tanh %58 : vector<8x128xf32>
    %60 = arith.subf %28, %43 : vector<8x128xf32>
    %61 = arith.addf %60, %59 : vector<8x128xf32>
    %62 = arith.addf %0, %61 : vector<8x128xf32>
    %c0_55 = arith.constant 0 : index
    %c0_56 = arith.constant 0 : index
    %c0_57 = arith.constant 0 : index
    %63 = vector.load %arg2[%c0_55, %c0_56, %c0_57] : memref<2x128x128xf32, #tpu.memory_space<vmem>>, vector<1x128x128xf32>
    %64 = vector.shape_cast %63 : vector<1x128x128xf32> to vector<128x128xf32>
    %cst_58 = arith.constant dense<0.000000e+00> : vector<8x128xf32>
    %65 = tpu.matmul %62, %64, %cst_58 {dimension_numbers = #tpu.dot_dimension_numbers<[1], [0], [0], [1], [0, 0, 1, 1], [], []>} : vector<8x128xf32>, vector<128x128xf32>, vector<8x128xf32> -> vector<8x128xf32>
    %66 = vector.broadcast %14 : vector<1x128xf32> to vector<8x128xf32>
    %67 = arith.addf %65, %66 : vector<8x128xf32>
    %68 = math.tanh %67 : vector<8x128xf32>
    %c1_59 = arith.constant 1 : index
    %c0_60 = arith.constant 0 : index
    %c0_61 = arith.constant 0 : index
    %69 = vector.load %arg2[%c1_59, %c0_60, %c0_61] : memref<2x128x128xf32, #tpu.memory_space<vmem>>, vector<1x128x128xf32>
    %70 = vector.shape_cast %69 : vector<1x128x128xf32> to vector<128x128xf32>
    %cst_62 = arith.constant dense<0.000000e+00> : vector<8x128xf32>
    %71 = tpu.matmul %68, %70, %cst_62 {dimension_numbers = #tpu.dot_dimension_numbers<[1], [0], [0], [1], [0, 0, 1, 1], [], []>} : vector<8x128xf32>, vector<128x128xf32>, vector<8x128xf32> -> vector<8x128xf32>
    %72 = vector.broadcast %16 : vector<1x128xf32> to vector<8x128xf32>
    %73 = arith.addf %71, %72 : vector<8x128xf32>
    %74 = math.tanh %73 : vector<8x128xf32>
    %75 = arith.addf %43, %59 : vector<8x128xf32>
    %cst_63 = arith.constant 3.000000e+00 : f32
    %76 = vector.broadcast %cst_63 : f32 to vector<8x128xf32>
    %77 = arith.mulf %76, %75 : vector<8x128xf32>
    %78 = arith.addf %28, %77 : vector<8x128xf32>
    %79 = arith.addf %78, %74 : vector<8x128xf32>
    %cst_64 = arith.constant 1.250000e-01 : f32
    %80 = vector.broadcast %cst_64 : f32 to vector<8x128xf32>
    %81 = arith.mulf %79, %80 : vector<8x128xf32>
    %82 = arith.addf %0, %81 : vector<8x128xf32>
    %c0_65 = arith.constant 0 : index
    %c0_66 = arith.constant 0 : index
    %83 = vector.load %arg4[%c0_65, %c0_66] : memref<8x128xf32, #tpu.memory_space<vmem>>, vector<8x128xf32>
    tpu.vector_store %arg4[%c0_65, %c0_66], %82 {strides = array<i32>} : memref<8x128xf32, #tpu.memory_space<vmem>>, vector<8x128xf32>,
    return
  }
  func.func @transform_0(%arg0: i32) -> (i32, i32) {
    %c0_i32 = arith.constant 0 : i32
    %c0_i32_0 = arith.constant 0 : i32
    return %arg0, %c0_i32 : i32, i32
  }
  func.func @transform_1(%arg0: i32) -> (i32, i32, i32) {
    %c0_i32 = arith.constant 0 : i32
    %c0_i32_0 = arith.constant 0 : i32
    %c0_i32_1 = arith.constant 0 : i32
    %c0_i32_2 = arith.constant 0 : i32
    return %c0_i32, %c0_i32_0, %c0_i32_1 : i32, i32, i32
  }
  func.func @transform_2(%arg0: i32) -> (i32, i32, i32, i32) {
    %c0_i32 = arith.constant 0 : i32
    %c0_i32_0 = arith.constant 0 : i32
    %c0_i32_1 = arith.constant 0 : i32
    %c0_i32_2 = arith.constant 0 : i32
    %c0_i32_3 = arith.constant 0 : i32
    return %c0_i32, %c0_i32_0, %c0_i32_1, %c0_i32_2 : i32, i32, i32, i32
  }
  func.func @transform_3(%arg0: i32) -> (i32, i32) {
    %c0_i32 = arith.constant 0 : i32
    %c0_i32_0 = arith.constant 0 : i32
    return %arg0, %c0_i32 : i32, i32
  }
}

</mosaic_0001>

<llo_original>
// kernel: tpu_custom_call.1
$region0: #{tpu_custom_call.1}
  #allocation0 [shape = 'u32[]', space=smem, size = 0x4, offset = 0x4, fixed_abs, tag = 'smem constant byte address 0x4 - core index']
  #allocation1 [shape = 'u32[144,128]{1,0:T(1,128)}', space=vmem, size = 0x12000, scoped, tag = 'internal scratch']
  %s0 = inlined_call_operand.hbm [shape: f32[8,128], index: 0, kind: input, shape index: {}]
  %s1 = inlined_call_operand.hbm [shape: f32[2,128,128], index: 1, kind: input, shape index: {}]
  %s2 = inlined_call_operand.hbm [shape: f32[4,2,1,128], index: 2, kind: input, shape index: {}]
  %s3 = inlined_call_operand.hbm [shape: f32[8,128], index: 3, kind: output, shape index: {}]
  %s4 = sld [smem:[#allocation0]]
  $region34: #{tpu_custom_call.1} parent=0
    _
  %s6 = ssub.s32 1, %s4
  %s7 = scalar_select 0, %s6, %s4
  $region1: #{tpu_custom_call.1} parent=0
    #allocation2 [shape = 'u8[4096]{0}', space=vmem, size = 0x1000, scoped, tag = 'input window, operand 0, single buffered']
    #allocation3 [shape = 's32[1]{0}', space=sflag, size = 0x4, scoped, tag = 'scoped memory for tpu_custom_call.1']
    #allocation4 [shape = 's32[1]{0}', space=sflag, size = 0x4, scoped, tag = 'scoped memory for tpu_custom_call.1']
    #allocation5 [shape = 'u8[131072]{0}', space=vmem, size = 0x20000, scoped, tag = 'input window, operand 1, single buffered']
    #allocation6 [shape = 's32[1]{0}', space=sflag, size = 0x4, scoped, tag = 'scoped memory for tpu_custom_call.1']
    #allocation7 [shape = 'u8[4096]{0}', space=vmem, size = 0x1000, scoped, tag = 'input window, operand 2, single buffered']
    #allocation8 [shape = 'u8[4096]{0}', space=vmem, size = 0x1000, scoped, tag = 'output window, operand 0, single buffered']
    %8 = vsyncpa [#allocation3], 0
    %9 = vsyncpa [#allocation6], 0
    %10 = vsyncpa [#allocation4], 0
    // Predicated region
    $region2: #{tpu_custom_call.1} parent=1 // pred_check
      _
    $region3: #{tpu_custom_call.1} parent=1 // pred_check_branch
      %12 = sbr.rel (0) target = $region5
    $region4: #{tpu_custom_call.1} parent=1 // pred_region
      %s14 = ssub.s32 128, 128
      %15 = vsyncadd [#allocation3], %s14
      %s17 = sshll.u32 [#allocation2], 4
      %s18 = int_to_ptr.vmem [resolvable:$true] %s17
      %20 = dma.hbm_to_vmem [thread:$0]  %s0, 128, %s18, [#allocation3]
    $region5: #{tpu_custom_call.1} parent=1 // pred_fallthru
      _
    // Predicated region
    $region6: #{tpu_custom_call.1} parent=1 // pred_check
      _
    $region7: #{tpu_custom_call.1} parent=1 // pred_check_branch
      %22 = sbr.rel (0) target = $region9
    $region8: #{tpu_custom_call.1} parent=1 // pred_region
      %s24 = ssub.s32 4096, 4096
      %25 = vsyncadd [#allocation6], %s24
      %s26 = sshll.u32 [#allocation5], 4
      %s27 = int_to_ptr.vmem [resolvable:$true] %s26
      %32 = dma.hbm_to_vmem [thread:$0]  %s1, 4096, %s27, [#allocation6], 128, 128, 8
    $region9: #{tpu_custom_call.1} parent=1 // pred_fallthru
      _
    // Predicated region
    $region10: #{tpu_custom_call.1} parent=1 // pred_check
      _
    $region11: #{tpu_custom_call.1} parent=1 // pred_check_branch
      %34 = sbr.rel (0) target = $region13
    $region12: #{tpu_custom_call.1} parent=1 // pred_region
      %s36 = ssub.s32 128, 128
      %37 = vsyncadd [#allocation6], %s36
      %s38 = sshll.u32 [#allocation7], 4
      %s39 = int_to_ptr.vmem [resolvable:$true] %s38
      %44 = dma.hbm_to_vmem [thread:$0]  %s2, 128, %s39, [#allocation6], 16, 16, 1
    $region13: #{tpu_custom_call.1} parent=1 // pred_fallthru
      _
    // Predicated region
    $region14: #{tpu_custom_call.1} parent=1 // pred_check
      _
    $region15: #{tpu_custom_call.1} parent=1 // pred_check_branch
      %46 = sbr.rel (0) target = $region17
    $region16: #{tpu_custom_call.1} parent=1 // pred_region
      %47 = dma.done [#allocation3], 128
    $region17: #{tpu_custom_call.1} parent=1 // pred_fallthru
      _
    // Predicated region
    $region18: #{tpu_custom_call.1} parent=1 // pred_check
      _
    $region19: #{tpu_custom_call.1} parent=1 // pred_check_branch
      %49 = sbr.rel (0) target = $region21
    $region20: #{tpu_custom_call.1} parent=1 // pred_region
      %50 = dma.done [#allocation6], 4096
    $region21: #{tpu_custom_call.1} parent=1 // pred_fallthru
      _
    // Predicated region
    $region22: #{tpu_custom_call.1} parent=1 // pred_check
      _
    $region23: #{tpu_custom_call.1} parent=1 // pred_check_branch
      %52 = sbr.rel (0) target = $region25
    $region24: #{tpu_custom_call.1} parent=1 // pred_region
      %53 = dma.done [#allocation6], 128
    $region25: #{tpu_custom_call.1} parent=1 // pred_fallthru
      _
    %v54 = vld [vmem:[#allocation2] sm:$0xff]
    %v55 = vld [vmem:[#allocation7] sm:$0x1]
    %s56 = scalar_lea.vmem [#allocation7], 1
    %v57 = vld [vmem:[%s56] sm:$0x1]
    %s58 = scalar_lea.vmem [#allocation7], 2
    %v59 = vld [vmem:[%s58] sm:$0x1]
    %s60 = scalar_lea.vmem [#allocation7], 3
    %v61 = vld [vmem:[%s60] sm:$0x1]
    %s62 = scalar_lea.vmem [#allocation7], 4
    %v63 = vld [vmem:[%s62] sm:$0x1]
    %s64 = scalar_lea.vmem [#allocation7], 5
    %v65 = vld [vmem:[%s64] sm:$0x1]
    %s66 = scalar_lea.vmem [#allocation7], 6
    %v67 = vld [vmem:[%s66] sm:$0x1]
    %s68 = scalar_lea.vmem [#allocation7], 7
    %v69 = vld [vmem:[%s68] sm:$0x1]
    %v70 = vld [vmem:[#allocation5] sm:$0xff]
    %v71 = vld [vmem:[#allocation5 + $0x8] sm:$0xff]
    %v72 = vld [vmem:[#allocation5 + $0x10] sm:$0xff]
    %v73 = vld [vmem:[#allocation5 + $0x18] sm:$0xff]
    %v74 = vld [vmem:[#allocation5 + $0x20] sm:$0xff]
    %v75 = vld [vmem:[#allocation5 + $0x28] sm:$0xff]
    %v76 = vld [vmem:[#allocation5 + $0x30] sm:$0xff]
    %v77 = vld [vmem:[#allocation5 + $0x38] sm:$0xff]
    %v78 = vld [vmem:[#allocation5 + $0x40] sm:$0xff]
    %v79 = vld [vmem:[#allocation5 + $0x48] sm:$0xff]
    %v80 = vld [vmem:[#allocation5 + $0x50] sm:$0xff]
    %v81 = vld [vmem:[#allocation5 + $0x58] sm:$0xff]
    %v82 = vld [vmem:[#allocation5 + $0x60] sm:$0xff]
    %v83 = vld [vmem:[#allocation5 + $0x68] sm:$0xff]
    %v84 = vld [vmem:[#allocation5 + $0x70] sm:$0xff]
    %v85 = vld [vmem:[#allocation5 + $0x78] sm:$0xff]
    %v87 = vlaneseq
    %v88 = vshrl.u32 %v87, 7
    %v89 = vsub.s32 0, %v88
    %v90 = vrot.slane %v55, %v89
    %92 = vmatprep.subr.mxu0 0.0
    %93 = vmatpush1.msra.mxu0 %v85
    %94 = vmatprep.subr.mxu0 0.0
    %95 = vmatpush1.msra.mxu0 %v84
    %96 = vmatprep.subr.mxu0 0.0
    %97 = vmatpush1.msra.mxu0 %v83
    %98 = vmatprep.subr.mxu0 0.0
    %99 = vmatpush1.msra.mxu0 %v82
    %100 = vmatprep.subr.mxu0 0.0
    %101 = vmatpush1.msra.mxu0 %v81
    %102 = vmatprep.subr.mxu0 0.0
    %103 = vmatpush1.msra.mxu0 %v80
    %104 = vmatprep.subr.mxu0 0.0
    %105 = vmatpush1.msra.mxu0 %v79
    %106 = vmatprep.subr.mxu0 0.0
    %107 = vmatpush1.msra.mxu0 %v78
    %108 = vmatprep.subr.mxu0 0.0
    %109 = vmatpush1.msra.mxu0 %v77
    %110 = vmatprep.subr.mxu0 0.0
    %111 = vmatpush1.msra.mxu0 %v76
    %112 = vmatprep.subr.mxu0 0.0
    %113 = vmatpush1.msra.mxu0 %v75
    %114 = vmatprep.subr.mxu0 0.0
    %115 = vmatpush1.msra.mxu0 %v74
    %116 = vmatprep.subr.mxu0 0.0
    %117 = vmatpush1.msra.mxu0 %v73
    %118 = vmatprep.subr.mxu0 0.0
    %119 = vmatpush1.msra.mxu0 %v72
    %120 = vmatprep.subr.mxu0 0.0
    %121 = vmatpush1.msra.mxu0 %v71
    %122 = vmatprep.subr.mxu0 0.0
    %123 = vmatpush1.msra.mxu0 %v70
    %124 = vmatprep.subr.mxu0 0.0
    %125 = vmatpush2.msra.mxu0 0.0
    %126 = vmatprep.subr.mxu0 0.0
    %127 = vmatpush2.msra.mxu0 0.0
    %128 = vmatprep.subr.mxu0 0.0
    %129 = vmatpush2.msra.mxu0 0.0
    %130 = vmatprep.subr.mxu0 0.0
    %131 = vmatpush2.msra.mxu0 0.0
    %132 = vmatprep.subr.mxu0 0.0
    %133 = vmatpush2.msra.mxu0 0.0
    %134 = vmatprep.subr.mxu0 0.0
    %135 = vmatpush2.msra.mxu0 0.0
    %136 = vmatprep.subr.mxu0 0.0
    %137 = vmatpush2.msra.mxu0 0.0
    %138 = vmatprep.subr.mxu0 0.0
    %139 = vmatpush2.msra.mxu0 0.0
    %140 = vmatprep.subr.mxu0 0.0
    %141 = vmatpush2.msra.mxu0 0.0
    %142 = vmatprep.subr.mxu0 0.0
    %143 = vmatpush2.msra.mxu0 0.0
    %144 = vmatprep.subr.mxu0 0.0
    %145 = vmatpush2.msra.mxu0 0.0
    %146 = vmatprep.subr.mxu0 0.0
    %147 = vmatpush2.msra.mxu0 0.0
    %148 = vmatprep.subr.mxu0 0.0
    %149 = vmatpush2.msra.mxu0 0.0
    %150 = vmatprep.subr.mxu0 0.0
    %151 = vmatpush2.msra.mxu0 0.0
    %152 = vmatprep.subr.mxu0 0.0
    %153 = vmatpush2.msra.mxu0 0.0
    %154 = vmatprep.subr.mxu0 0.0
    %155 = vmatpush2.msra.mxu0 0.0
    %156 = vmatprep.mubr.f32.mxu0 0.0
    %157 = vmatmul.mubr.f32.gmra.mxu0 %v54
    %v158 = vpop.f32.mrf.mxu0
    %v159 = vadd.f32 %v90, %v158
    %v160 = vpop.f32.mrf.mxu0
    %161 = vdwg.mxu0
    %v162 = vtanh.pop %v159
    %s163 = scalar_lea.vmem [#allocation5], 128
    %v164 = vld [vmem:[%s163] sm:$0xff]
    %v165 = vld [vmem:[%s163 + $0x8] sm:$0xff]
    %v166 = vld [vmem:[%s163 + $0x10] sm:$0xff]
    %v167 = vld [vmem:[%s163 + $0x18] sm:$0xff]
    %v168 = vld [vmem:[%s163 + $0x20] sm:$0xff]
    %v169 = vld [vmem:[%s163 + $0x28] sm:$0xff]
    %v170 = vld [vmem:[%s163 + $0x30] sm:$0xff]
    %v171 = vld [vmem:[%s163 + $0x38] sm:$0xff]
    %v172 = vld [vmem:[%s163 + $0x40] sm:$0xff]
    %v173 = vld [vmem:[%s163 + $0x48] sm:$0xff]
    %v174 = vld [vmem:[%s163 + $0x50] sm:$0xff]
    %v175 = vld [vmem:[%s163 + $0x58] sm:$0xff]
    %v176 = vld [vmem:[%s163 + $0x60] sm:$0xff]
    %v177 = vld [vmem:[%s163 + $0x68] sm:$0xff]
    %v178 = vld [vmem:[%s163 + $0x70] sm:$0xff]
    %v179 = vld [vmem:[%s163 + $0x78] sm:$0xff]
    %v181 = vlaneseq
    %v182 = vshrl.u32 %v181, 7
    %v183 = vsub.s32 0, %v182
    %v184 = vrot.slane %v57, %v183
    %186 = vmatprep.subr.mxu0 0.0
    %187 = vmatpush1.msra.mxu0 %v179
    %188 = vmatprep.subr.mxu0 0.0
    %189 = vmatpush1.msra.mxu0 %v178
    %190 = vmatprep.subr.mxu0 0.0
    %191 = vmatpush1.msra.mxu0 %v177
    %192 = vmatprep.subr.mxu0 0.0
    %193 = vmatpush1.msra.mxu0 %v176
    %194 = vmatprep.subr.mxu0 0.0
    %195 = vmatpush1.msra.mxu0 %v175
    %196 = vmatprep.subr.mxu0 0.0
    %197 = vmatpush1.msra.mxu0 %v174
    %198 = vmatprep.subr.mxu0 0.0
    %199 = vmatpush1.msra.mxu0 %v173
    %200 = vmatprep.subr.mxu0 0.0
    %201 = vmatpush1.msra.mxu0 %v172
    %202 = vmatprep.subr.mxu0 0.0
    %203 = vmatpush1.msra.mxu0 %v171
    %204 = vmatprep.subr.mxu0 0.0
    %205 = vmatpush1.msra.mxu0 %v170
    %206 = vmatprep.subr.mxu0 0.0
    %207 = vmatpush1.msra.mxu0 %v169
    %208 = vmatprep.subr.mxu0 0.0
    %209 = vmatpush1.msra.mxu0 %v168
    %210 = vmatprep.subr.mxu0 0.0
    %211 = vmatpush1.msra.mxu0 %v167
    %212 = vmatprep.subr.mxu0 0.0
    %213 = vmatpush1.msra.mxu0 %v166
    %214 = vmatprep.subr.mxu0 0.0
    %215 = vmatpush1.msra.mxu0 %v165
    %216 = vmatprep.subr.mxu0 0.0
    %217 = vmatpush1.msra.mxu0 %v164
    %218 = vmatprep.subr.mxu0 0.0
    %219 = vmatpush2.msra.mxu0 0.0
    %220 = vmatprep.subr.mxu0 0.0
    %221 = vmatpush2.msra.mxu0 0.0
    %222 = vmatprep.subr.mxu0 0.0
    %223 = vmatpush2.msra.mxu0 0.0
    %224 = vmatprep.subr.mxu0 0.0
    %225 = vmatpush2.msra.mxu0 0.0
    %226 = vmatprep.subr.mxu0 0.0
    %227 = vmatpush2.msra.mxu0 0.0
    %228 = vmatprep.subr.mxu0 0.0
    %229 = vmatpush2.msra.mxu0 0.0
    %230 = vmatprep.subr.mxu0 0.0
    %231 = vmatpush2.msra.mxu0 0.0
    %232 = vmatprep.subr.mxu0 0.0
    %233 = vmatpush2.msra.mxu0 0.0
    %234 = vmatprep.subr.mxu0 0.0
    %235 = vmatpush2.msra.mxu0 0.0
    %236 = vmatprep.subr.mxu0 0.0
    %237 = vmatpush2.msra.mxu0 0.0
    %238 = vmatprep.subr.mxu0 0.0
    %239 = vmatpush2.msra.mxu0 0.0
    %240 = vmatprep.subr.mxu0 0.0
    %241 = vmatpush2.msra.mxu0 0.0
    %242 = vmatprep.subr.mxu0 0.0
    %243 = vmatpush2.msra.mxu0 0.0
    %244 = vmatprep.subr.mxu0 0.0
    %245 = vmatpush2.msra.mxu0 0.0
    %246 = vmatprep.subr.mxu0 0.0
    %247 = vmatpush2.msra.mxu0 0.0
    %248 = vmatprep.subr.mxu0 0.0
    %249 = vmatpush2.msra.mxu0 0.0
    %250 = vmatprep.mubr.f32.mxu0 0.0
    %251 = vmatmul.mubr.f32.gmra.mxu0 %v162
    %v252 = vpop.f32.mrf.mxu0
    %v253 = vadd.f32 %v184, %v252
    %v254 = vpop.f32.mrf.mxu0
    %255 = vdwg.mxu0
    %v256 = vtanh.pop %v253
    %v257 = vmul.f32 %v256, 0.33333334
    %v258 = vadd.f32 %v54, %v257
    %v260 = vlaneseq
    %v261 = vshrl.u32 %v260, 7
    %v262 = vsub.s32 0, %v261
    %v263 = vrot.slane %v59, %v262
    %265 = vmatprep.subr.mxu0 0.0
    %266 = vmatpush1.msra.mxu0 %v85
    %267 = vmatprep.subr.mxu0 0.0
    %268 = vmatpush1.msra.mxu0 %v84
    %269 = vmatprep.subr.mxu0 0.0
    %270 = vmatpush1.msra.mxu0 %v83
    %271 = vmatprep.subr.mxu0 0.0
    %272 = vmatpush1.msra.mxu0 %v82
    %273 = vmatprep.subr.mxu0 0.0
    %274 = vmatpush1.msra.mxu0 %v81
    %275 = vmatprep.subr.mxu0 0.0
    %276 = vmatpush1.msra.mxu0 %v80
    %277 = vmatprep.subr.mxu0 0.0
    %278 = vmatpush1.msra.mxu0 %v79
    %279 = vmatprep.subr.mxu0 0.0
    %280 = vmatpush1.msra.mxu0 %v78
    %281 = vmatprep.subr.mxu0 0.0
    %282 = vmatpush1.msra.mxu0 %v77
    %283 = vmatprep.subr.mxu0 0.0
    %284 = vmatpush1.msra.mxu0 %v76
    %285 = vmatprep.subr.mxu0 0.0
    %286 = vmatpush1.msra.mxu0 %v75
    %287 = vmatprep.subr.mxu0 0.0
    %288 = vmatpush1.msra.mxu0 %v74
    %289 = vmatprep.subr.mxu0 0.0
    %290 = vmatpush1.msra.mxu0 %v73
    %291 = vmatprep.subr.mxu0 0.0
    %292 = vmatpush1.msra.mxu0 %v72
    %293 = vmatprep.subr.mxu0 0.0
    %294 = vmatpush1.msra.mxu0 %v71
    %295 = vmatprep.subr.mxu0 0.0
    %296 = vmatpush1.msra.mxu0 %v70
    %297 = vmatprep.subr.mxu0 0.0
    %298 = vmatpush2.msra.mxu0 0.0
    %299 = vmatprep.subr.mxu0 0.0
    %300 = vmatpush2.msra.mxu0 0.0
    %301 = vmatprep.subr.mxu0 0.0
    %302 = vmatpush2.msra.mxu0 0.0
    %303 = vmatprep.subr.mxu0 0.0
    %304 = vmatpush2.msra.mxu0 0.0
    %305 = vmatprep.subr.mxu0 0.0
    %306 = vmatpush2.msra.mxu0 0.0
    %307 = vmatprep.subr.mxu0 0.0
    %308 = vmatpush2.msra.mxu0 0.0
    %309 = vmatprep.subr.mxu0 0.0
    %310 = vmatpush2.msra.mxu0 0.0
    %311 = vmatprep.subr.mxu0 0.0
    %312 = vmatpush2.msra.mxu0 0.0
    %313 = vmatprep.subr.mxu0 0.0
    %314 = vmatpush2.msra.mxu0 0.0
    %315 = vmatprep.subr.mxu0 0.0
    %316 = vmatpush2.msra.mxu0 0.0
    %317 = vmatprep.subr.mxu0 0.0
    %318 = vmatpush2.msra.mxu0 0.0
    %319 = vmatprep.subr.mxu0 0.0
    %320 = vmatpush2.msra.mxu0 0.0
    %321 = vmatprep.subr.mxu0 0.0
    %322 = vmatpush2.msra.mxu0 0.0
    %323 = vmatprep.subr.mxu0 0.0
    %324 = vmatpush2.msra.mxu0 0.0
    %325 = vmatprep.subr.mxu0 0.0
    %326 = vmatpush2.msra.mxu0 0.0
    %327 = vmatprep.subr.mxu0 0.0
    %328 = vmatpush2.msra.mxu0 0.0
    %329 = vmatprep.mubr.f32.mxu0 0.0
    %330 = vmatmul.mubr.f32.gmra.mxu0 %v258
    %v331 = vpop.f32.mrf.mxu0
    %v332 = vadd.f32 %v263, %v331
    %v333 = vpop.f32.mrf.mxu0
    %334 = vdwg.mxu0
    %v335 = vtanh.pop %v332
    %v337 = vlaneseq
    %v338 = vshrl.u32 %v337, 7
    %v339 = vsub.s32 0, %v338
    %v340 = vrot.slane %v61, %v339
    %342 = vmatprep.subr.mxu0 0.0
    %343 = vmatpush1.msra.mxu0 %v179
    %344 = vmatprep.subr.mxu0 0.0
    %345 = vmatpush1.msra.mxu0 %v178
    %346 = vmatprep.subr.mxu0 0.0
    %347 = vmatpush1.msra.mxu0 %v177
    %348 = vmatprep.subr.mxu0 0.0
    %349 = vmatpush1.msra.mxu0 %v176
    %350 = vmatprep.subr.mxu0 0.0
    %351 = vmatpush1.msra.mxu0 %v175
    %352 = vmatprep.subr.mxu0 0.0
    %353 = vmatpush1.msra.mxu0 %v174
    %354 = vmatprep.subr.mxu0 0.0
    %355 = vmatpush1.msra.mxu0 %v173
    %356 = vmatprep.subr.mxu0 0.0
    %357 = vmatpush1.msra.mxu0 %v172
    %358 = vmatprep.subr.mxu0 0.0
    %359 = vmatpush1.msra.mxu0 %v171
    %360 = vmatprep.subr.mxu0 0.0
    %361 = vmatpush1.msra.mxu0 %v170
    %362 = vmatprep.subr.mxu0 0.0
    %363 = vmatpush1.msra.mxu0 %v169
    %364 = vmatprep.subr.mxu0 0.0
    %365 = vmatpush1.msra.mxu0 %v168
    %366 = vmatprep.subr.mxu0 0.0
    %367 = vmatpush1.msra.mxu0 %v167
    %368 = vmatprep.subr.mxu0 0.0
    %369 = vmatpush1.msra.mxu0 %v166
    %370 = vmatprep.subr.mxu0 0.0
    %371 = vmatpush1.msra.mxu0 %v165
    %372 = vmatprep.subr.mxu0 0.0
    %373 = vmatpush1.msra.mxu0 %v164
    %374 = vmatprep.subr.mxu0 0.0
    %375 = vmatpush2.msra.mxu0 0.0
    %376 = vmatprep.subr.mxu0 0.0
    %377 = vmatpush2.msra.mxu0 0.0
    %378 = vmatprep.subr.mxu0 0.0
    %379 = vmatpush2.msra.mxu0 0.0
    %380 = vmatprep.subr.mxu0 0.0
    %381 = vmatpush2.msra.mxu0 0.0
    %382 = vmatprep.subr.mxu0 0.0
    %383 = vmatpush2.msra.mxu0 0.0
    %384 = vmatprep.subr.mxu0 0.0
    %385 = vmatpush2.msra.mxu0 0.0
    %386 = vmatprep.subr.mxu0 0.0
    %387 = vmatpush2.msra.mxu0 0.0
    %388 = vmatprep.subr.mxu0 0.0
    %389 = vmatpush2.msra.mxu0 0.0
    %390 = vmatprep.subr.mxu0 0.0
    %391 = vmatpush2.msra.mxu0 0.0
    %392 = vmatprep.subr.mxu0 0.0
    %393 = vmatpush2.msra.mxu0 0.0
    %394 = vmatprep.subr.mxu0 0.0
    %395 = vmatpush2.msra.mxu0 0.0
    %396 = vmatprep.subr.mxu0 0.0
    %397 = vmatpush2.msra.mxu0 0.0
    %398 = vmatprep.subr.mxu0 0.0
    %399 = vmatpush2.msra.mxu0 0.0
    %400 = vmatprep.subr.mxu0 0.0
    %401 = vmatpush2.msra.mxu0 0.0
    %402 = vmatprep.subr.mxu0 0.0
    %403 = vmatpush2.msra.mxu0 0.0
    %404 = vmatprep.subr.mxu0 0.0
    %405 = vmatpush2.msra.mxu0 0.0
    %406 = vmatprep.mubr.f32.mxu0 0.0
    %407 = vmatmul.mubr.f32.gmra.mxu0 %v335
    %v408 = vpop.f32.mrf.mxu0
    %v409 = vadd.f32 %v340, %v408
    %v410 = vpop.f32.mrf.mxu0
    %411 = vdwg.mxu0
    %v412 = vtanh.pop %v409
    %v413 = vsub.f32 %v412, %v257
    %v414 = vadd.f32 %v54, %v413
    %v416 = vlaneseq
    %v417 = vshrl.u32 %v416, 7
    %v418 = vsub.s32 0, %v417
    %v419 = vrot.slane %v63, %v418
    %421 = vmatprep.subr.mxu0 0.0
    %422 = vmatpush1.msra.mxu0 %v85
    %423 = vmatprep.subr.mxu0 0.0
    %424 = vmatpush1.msra.mxu0 %v84
    %425 = vmatprep.subr.mxu0 0.0
    %426 = vmatpush1.msra.mxu0 %v83
    %427 = vmatprep.subr.mxu0 0.0
    %428 = vmatpush1.msra.mxu0 %v82
    %429 = vmatprep.subr.mxu0 0.0
    %430 = vmatpush1.msra.mxu0 %v81
    %431 = vmatprep.subr.mxu0 0.0
    %432 = vmatpush1.msra.mxu0 %v80
    %433 = vmatprep.subr.mxu0 0.0
    %434 = vmatpush1.msra.mxu0 %v79
    %435 = vmatprep.subr.mxu0 0.0
    %436 = vmatpush1.msra.mxu0 %v78
    %437 = vmatprep.subr.mxu0 0.0
    %438 = vmatpush1.msra.mxu0 %v77
    %439 = vmatprep.subr.mxu0 0.0
    %440 = vmatpush1.msra.mxu0 %v76
    %441 = vmatprep.subr.mxu0 0.0
    %442 = vmatpush1.msra.mxu0 %v75
    %443 = vmatprep.subr.mxu0 0.0
    %444 = vmatpush1.msra.mxu0 %v74
    %445 = vmatprep.subr.mxu0 0.0
    %446 = vmatpush1.msra.mxu0 %v73
    %447 = vmatprep.subr.mxu0 0.0
    %448 = vmatpush1.msra.mxu0 %v72
    %449 = vmatprep.subr.mxu0 0.0
    %450 = vmatpush1.msra.mxu0 %v71
    %451 = vmatprep.subr.mxu0 0.0
    %452 = vmatpush1.msra.mxu0 %v70
    %453 = vmatprep.subr.mxu0 0.0
    %454 = vmatpush2.msra.mxu0 0.0
    %455 = vmatprep.subr.mxu0 0.0
    %456 = vmatpush2.msra.mxu0 0.0
    %457 = vmatprep.subr.mxu0 0.0
    %458 = vmatpush2.msra.mxu0 0.0
    %459 = vmatprep.subr.mxu0 0.0
    %460 = vmatpush2.msra.mxu0 0.0
    %461 = vmatprep.subr.mxu0 0.0
    %462 = vmatpush2.msra.mxu0 0.0
    %463 = vmatprep.subr.mxu0 0.0
    %464 = vmatpush2.msra.mxu0 0.0
    %465 = vmatprep.subr.mxu0 0.0
    %466 = vmatpush2.msra.mxu0 0.0
    %467 = vmatprep.subr.mxu0 0.0
    %468 = vmatpush2.msra.mxu0 0.0
    %469 = vmatprep.subr.mxu0 0.0
    %470 = vmatpush2.msra.mxu0 0.0
    %471 = vmatprep.subr.mxu0 0.0
    %472 = vmatpush2.msra.mxu0 0.0
    %473 = vmatprep.subr.mxu0 0.0
    %474 = vmatpush2.msra.mxu0 0.0
    %475 = vmatprep.subr.mxu0 0.0
    %476 = vmatpush2.msra.mxu0 0.0
    %477 = vmatprep.subr.mxu0 0.0
    %478 = vmatpush2.msra.mxu0 0.0
    %479 = vmatprep.subr.mxu0 0.0
    %480 = vmatpush2.msra.mxu0 0.0
    %481 = vmatprep.subr.mxu0 0.0
    %482 = vmatpush2.msra.mxu0 0.0
    %483 = vmatprep.subr.mxu0 0.0
    %484 = vmatpush2.msra.mxu0 0.0
    %485 = vmatprep.mubr.f32.mxu0 0.0
    %486 = vmatmul.mubr.f32.gmra.mxu0 %v414
    %v487 = vpop.f32.mrf.mxu0
    %v488 = vadd.f32 %v419, %v487
    %v489 = vpop.f32.mrf.mxu0
    %490 = vdwg.mxu0
    %v491 = vtanh.pop %v488
    %v493 = vlaneseq
    %v494 = vshrl.u32 %v493, 7
    %v495 = vsub.s32 0, %v494
    %v496 = vrot.slane %v65, %v495
    %498 = vmatprep.subr.mxu0 0.0
    %499 = vmatpush1.msra.mxu0 %v179
    %500 = vmatprep.subr.mxu0 0.0
    %501 = vmatpush1.msra.mxu0 %v178
    %502 = vmatprep.subr.mxu0 0.0
    %503 = vmatpush1.msra.mxu0 %v177
    %504 = vmatprep.subr.mxu0 0.0
    %505 = vmatpush1.msra.mxu0 %v176
    %506 = vmatprep.subr.mxu0 0.0
    %507 = vmatpush1.msra.mxu0 %v175
    %508 = vmatprep.subr.mxu0 0.0
    %509 = vmatpush1.msra.mxu0 %v174
    %510 = vmatprep.subr.mxu0 0.0
    %511 = vmatpush1.msra.mxu0 %v173
    %512 = vmatprep.subr.mxu0 0.0
    %513 = vmatpush1.msra.mxu0 %v172
    %514 = vmatprep.subr.mxu0 0.0
    %515 = vmatpush1.msra.mxu0 %v171
    %516 = vmatprep.subr.mxu0 0.0
    %517 = vmatpush1.msra.mxu0 %v170
    %518 = vmatprep.subr.mxu0 0.0
    %519 = vmatpush1.msra.mxu0 %v169
    %520 = vmatprep.subr.mxu0 0.0
    %521 = vmatpush1.msra.mxu0 %v168
    %522 = vmatprep.subr.mxu0 0.0
    %523 = vmatpush1.msra.mxu0 %v167
    %524 = vmatprep.subr.mxu0 0.0
    %525 = vmatpush1.msra.mxu0 %v166
    %526 = vmatprep.subr.mxu0 0.0
    %527 = vmatpush1.msra.mxu0 %v165
    %528 = vmatprep.subr.mxu0 0.0
    %529 = vmatpush1.msra.mxu0 %v164
    %530 = vmatprep.subr.mxu0 0.0
    %531 = vmatpush2.msra.mxu0 0.0
    %532 = vmatprep.subr.mxu0 0.0
    %533 = vmatpush2.msra.mxu0 0.0
    %534 = vmatprep.subr.mxu0 0.0
    %535 = vmatpush2.msra.mxu0 0.0
    %536 = vmatprep.subr.mxu0 0.0
    %537 = vmatpush2.msra.mxu0 0.0
    %538 = vmatprep.subr.mxu0 0.0
    %539 = vmatpush2.msra.mxu0 0.0
    %540 = vmatprep.subr.mxu0 0.0
    %541 = vmatpush2.msra.mxu0 0.0
    %542 = vmatprep.subr.mxu0 0.0
    %543 = vmatpush2.msra.mxu0 0.0
    %544 = vmatprep.subr.mxu0 0.0
    %545 = vmatpush2.msra.mxu0 0.0
    %546 = vmatprep.subr.mxu0 0.0
    %547 = vmatpush2.msra.mxu0 0.0
    %548 = vmatprep.subr.mxu0 0.0
    %549 = vmatpush2.msra.mxu0 0.0
    %550 = vmatprep.subr.mxu0 0.0
    %551 = vmatpush2.msra.mxu0 0.0
    %552 = vmatprep.subr.mxu0 0.0
    %553 = vmatpush2.msra.mxu0 0.0
    %554 = vmatprep.subr.mxu0 0.0
    %555 = vmatpush2.msra.mxu0 0.0
    %556 = vmatprep.subr.mxu0 0.0
    %557 = vmatpush2.msra.mxu0 0.0
    %558 = vmatprep.subr.mxu0 0.0
    %559 = vmatpush2.msra.mxu0 0.0
    %560 = vmatprep.subr.mxu0 0.0
    %561 = vmatpush2.msra.mxu0 0.0
    %562 = vmatprep.mubr.f32.mxu0 0.0
    %563 = vmatmul.mubr.f32.gmra.mxu0 %v491
    %v564 = vpop.f32.mrf.mxu0
    %v565 = vadd.f32 %v496, %v564
    %v566 = vpop.f32.mrf.mxu0
    %567 = vdwg.mxu0
    %v568 = vtanh.pop %v565
    %v569 = vsub.f32 %v256, %v412
    %v570 = vadd.f32 %v569, %v568
    %v571 = vadd.f32 %v54, %v570
    %v573 = vlaneseq
    %v574 = vshrl.u32 %v573, 7
    %v575 = vsub.s32 0, %v574
    %v576 = vrot.slane %v67, %v575
    %578 = vmatprep.subr.mxu0 0.0
    %579 = vmatpush1.msra.mxu0 %v85
    %580 = vmatprep.subr.mxu0 0.0
    %581 = vmatpush1.msra.mxu0 %v84
    %582 = vmatprep.subr.mxu0 0.0
    %583 = vmatpush1.msra.mxu0 %v83
    %584 = vmatprep.subr.mxu0 0.0
    %585 = vmatpush1.msra.mxu0 %v82
    %586 = vmatprep.subr.mxu0 0.0
    %587 = vmatpush1.msra.mxu0 %v81
    %588 = vmatprep.subr.mxu0 0.0
    %589 = vmatpush1.msra.mxu0 %v80
    %590 = vmatprep.subr.mxu0 0.0
    %591 = vmatpush1.msra.mxu0 %v79
    %592 = vmatprep.subr.mxu0 0.0
    %593 = vmatpush1.msra.mxu0 %v78
    %594 = vmatprep.subr.mxu0 0.0
    %595 = vmatpush1.msra.mxu0 %v77
    %596 = vmatprep.subr.mxu0 0.0
    %597 = vmatpush1.msra.mxu0 %v76
    %598 = vmatprep.subr.mxu0 0.0
    %599 = vmatpush1.msra.mxu0 %v75
    %600 = vmatprep.subr.mxu0 0.0
    %601 = vmatpush1.msra.mxu0 %v74
    %602 = vmatprep.subr.mxu0 0.0
    %603 = vmatpush1.msra.mxu0 %v73
    %604 = vmatprep.subr.mxu0 0.0
    %605 = vmatpush1.msra.mxu0 %v72
    %606 = vmatprep.subr.mxu0 0.0
    %607 = vmatpush1.msra.mxu0 %v71
    %608 = vmatprep.subr.mxu0 0.0
    %609 = vmatpush1.msra.mxu0 %v70
    %610 = vmatprep.subr.mxu0 0.0
    %611 = vmatpush2.msra.mxu0 0.0
    %612 = vmatprep.subr.mxu0 0.0
    %613 = vmatpush2.msra.mxu0 0.0
    %614 = vmatprep.subr.mxu0 0.0
    %615 = vmatpush2.msra.mxu0 0.0
    %616 = vmatprep.subr.mxu0 0.0
    %617 = vmatpush2.msra.mxu0 0.0
    %618 = vmatprep.subr.mxu0 0.0
    %619 = vmatpush2.msra.mxu0 0.0
    %620 = vmatprep.subr.mxu0 0.0
    %621 = vmatpush2.msra.mxu0 0.0
    %622 = vmatprep.subr.mxu0 0.0
    %623 = vmatpush2.msra.mxu0 0.0
    %624 = vmatprep.subr.mxu0 0.0
    %625 = vmatpush2.msra.mxu0 0.0
    %626 = vmatprep.subr.mxu0 0.0
    %627 = vmatpush2.msra.mxu0 0.0
    %628 = vmatprep.subr.mxu0 0.0
    %629 = vmatpush2.msra.mxu0 0.0
    %630 = vmatprep.subr.mxu0 0.0
    %631 = vmatpush2.msra.mxu0 0.0
    %632 = vmatprep.subr.mxu0 0.0
    %633 = vmatpush2.msra.mxu0 0.0
    %634 = vmatprep.subr.mxu0 0.0
    %635 = vmatpush2.msra.mxu0 0.0
    %636 = vmatprep.subr.mxu0 0.0
    %637 = vmatpush2.msra.mxu0 0.0
    %638 = vmatprep.subr.mxu0 0.0
    %639 = vmatpush2.msra.mxu0 0.0
    %640 = vmatprep.subr.mxu0 0.0
    %641 = vmatpush2.msra.mxu0 0.0
    %642 = vmatprep.mubr.f32.mxu0 0.0
    %643 = vmatmul.mubr.f32.gmra.mxu0 %v571
    %v644 = vpop.f32.mrf.mxu0
    %v645 = vadd.f32 %v576, %v644
    %v646 = vpop.f32.mrf.mxu0
    %647 = vdwg.mxu0
    %v648 = vtanh.pop %v645
    %v650 = vlaneseq
    %v651 = vshrl.u32 %v650, 7
    %v652 = vsub.s32 0, %v651
    %v653 = vrot.slane %v69, %v652
    %655 = vmatprep.subr.mxu0 0.0
    %656 = vmatpush1.msra.mxu0 %v179
    %657 = vmatprep.subr.mxu0 0.0
    %658 = vmatpush1.msra.mxu0 %v178
    %659 = vmatprep.subr.mxu0 0.0
    %660 = vmatpush1.msra.mxu0 %v177
    %661 = vmatprep.subr.mxu0 0.0
    %662 = vmatpush1.msra.mxu0 %v176
    %663 = vmatprep.subr.mxu0 0.0
    %664 = vmatpush1.msra.mxu0 %v175
    %665 = vmatprep.subr.mxu0 0.0
    %666 = vmatpush1.msra.mxu0 %v174
    %667 = vmatprep.subr.mxu0 0.0
    %668 = vmatpush1.msra.mxu0 %v173
    %669 = vmatprep.subr.mxu0 0.0
    %670 = vmatpush1.msra.mxu0 %v172
    %671 = vmatprep.subr.mxu0 0.0
    %672 = vmatpush1.msra.mxu0 %v171
    %673 = vmatprep.subr.mxu0 0.0
    %674 = vmatpush1.msra.mxu0 %v170
    %675 = vmatprep.subr.mxu0 0.0
    %676 = vmatpush1.msra.mxu0 %v169
    %677 = vmatprep.subr.mxu0 0.0
    %678 = vmatpush1.msra.mxu0 %v168
    %679 = vmatprep.subr.mxu0 0.0
    %680 = vmatpush1.msra.mxu0 %v167
    %681 = vmatprep.subr.mxu0 0.0
    %682 = vmatpush1.msra.mxu0 %v166
    %683 = vmatprep.subr.mxu0 0.0
    %684 = vmatpush1.msra.mxu0 %v165
    %685 = vmatprep.subr.mxu0 0.0
    %686 = vmatpush1.msra.mxu0 %v164
    %687 = vmatprep.subr.mxu0 0.0
    %688 = vmatpush2.msra.mxu0 0.0
    %689 = vmatprep.subr.mxu0 0.0
    %690 = vmatpush2.msra.mxu0 0.0
    %691 = vmatprep.subr.mxu0 0.0
    %692 = vmatpush2.msra.mxu0 0.0
    %693 = vmatprep.subr.mxu0 0.0
    %694 = vmatpush2.msra.mxu0 0.0
    %695 = vmatprep.subr.mxu0 0.0
    %696 = vmatpush2.msra.mxu0 0.0
    %697 = vmatprep.subr.mxu0 0.0
    %698 = vmatpush2.msra.mxu0 0.0
    %699 = vmatprep.subr.mxu0 0.0
    %700 = vmatpush2.msra.mxu0 0.0
    %701 = vmatprep.subr.mxu0 0.0
    %702 = vmatpush2.msra.mxu0 0.0
    %703 = vmatprep.subr.mxu0 0.0
    %704 = vmatpush2.msra.mxu0 0.0
    %705 = vmatprep.subr.mxu0 0.0
    %706 = vmatpush2.msra.mxu0 0.0
    %707 = vmatprep.subr.mxu0 0.0
    %708 = vmatpush2.msra.mxu0 0.0
    %709 = vmatprep.subr.mxu0 0.0
    %710 = vmatpush2.msra.mxu0 0.0
    %711 = vmatprep.subr.mxu0 0.0
    %712 = vmatpush2.msra.mxu0 0.0
    %713 = vmatprep.subr.mxu0 0.0
    %714 = vmatpush2.msra.mxu0 0.0
    %715 = vmatprep.subr.mxu0 0.0
    %716 = vmatpush2.msra.mxu0 0.0
    %717 = vmatprep.subr.mxu0 0.0
    %718 = vmatpush2.msra.mxu0 0.0
    %719 = vmatprep.mubr.f32.mxu0 0.0
    %720 = vmatmul.mubr.f32.gmra.mxu0 %v648
    %v721 = vpop.f32.mrf.mxu0
    %v722 = vadd.f32 %v653, %v721
    %v723 = vpop.f32.mrf.mxu0
    %724 = vdwg.mxu0
    %v725 = vtanh.pop %v722
    %v726 = vadd.f32 %v412, %v568
    %v727 = vmul.f32 %v726, 3.0
    %v728 = vadd.f32 %v256, %v727
    %v729 = vadd.f32 %v728, %v725
    %v730 = vmul.f32 %v729, 0.125
    %v731 = vadd.f32 %v54, %v730
    %732 = vst [vmem:[#allocation8] sm:$0xff] %v731
    // Predicated region
    $region26: #{tpu_custom_call.1} parent=1 // pred_check
      _
    $region27: #{tpu_custom_call.1} parent=1 // pred_check_branch
      %734 = sbr.rel (0) target = $region29
    $region28: #{tpu_custom_call.1} parent=1 // pred_region
      %s736 = ssub.s32 128, 128
      %737 = vsyncadd [#allocation4], %s736
      %s739 = sshll.u32 [#allocation8], 4
      %s740 = int_to_ptr.vmem [resolvable:$true] %s739
      %742 = dma.vmem_to_hbm [thread:$0]  %s740, 128, %s3, [#allocation4]
    $region29: #{tpu_custom_call.1} parent=1 // pred_fallthru
      _
    // Predicated region
    $region30: #{tpu_custom_call.1} parent=1 // pred_check
      _
    $region31: #{tpu_custom_call.1} parent=1 // pred_check_branch
      %744 = sbr.rel (0) target = $region33
    $region32: #{tpu_custom_call.1} parent=1 // pred_region
      %745 = dma.done [#allocation4], 128
    $region33: #{tpu_custom_call.1} parent=1 // pred_fallthru
      _
    %746 = vsyncpa [#allocation3], 1
    %747 = vsyncpa [#allocation6], 1
    %748 = vsyncpa [#allocation4], 1

</llo_original>
